<compile_context>
chip_gen: v6e
topology: v6e:2x2x1
jax: 0.10.0
libtpu: 0.0.40
codegen_flags: <defaults>
</compile_context>

<pallas_src>
import jax
import jax.numpy as jnp
from jax import lax
from jax.experimental import pallas as pl
from jax.experimental.pallas import tpu as pltpu


def _make_kernel(W, HW, OFF):
    """Build the fused depthwise-3x3 + bias kernel for one plane-block.

    x_ref    : [TP, HW]      flattened input planes (any float dtype)
    wb_ref   : [TP, 10]      per-plane folded weights (9 taps, row-major ky*3+kx)
                             + folded BN shift in column 9 (f32)
    mask_ref : [2, HW]       0/1 column-validity masks (row 0: dx=-1, row 1: dx=+1)
    o_ref    : [TP, HW]      output planes
    xpad_ref : [TP, FL] f32  scratch: zero halo + image at lane offset OFF
    """

    def kernel(x_ref, wb_ref, mask_ref, o_ref, xpad_ref):
        TP = o_ref.shape[0]
        halo = jnp.zeros((TP, W + 1), jnp.float32)
        # Refresh the halo every step (scratch persists across steps / cores,
        # so do NOT rely on a step-0-only init under "parallel" semantics).
        xpad_ref[:, OFF - W - 1:OFF] = halo
        xpad_ref[:, OFF + HW:OFF + HW + W + 1] = halo
        # Single up-cast of the tile into the f32 padded scratch (lane-aligned store).
        xpad_ref[:, OFF:OFF + HW] = x_ref[...].astype(jnp.float32)

        def win(dy, dx):
            s = OFF + dy * W + dx                 # static lane offset
            return xpad_ref[:, s:s + HW]          # x[h+dy, w+dx] in flat coords

        def wcol(k):                              # (TP,1) per-plane scalar column
            return wb_ref[:, k:k + 1]

        def tap_group(dx):                        # sum over dy of w[dy,dx]*win(dy,dx)
            g = wcol(0 + dx + 1) * win(-1, dx)
            g = g + wcol(3 + dx + 1) * win(0, dx)
            g = g + wcol(6 + dx + 1) * win(1, dx)
            return g

        acc = tap_group(0)
        acc = acc + tap_group(-1) * mask_ref[0:1, :]   # zero out wrapped w==0 column
        acc = acc + tap_group(1) * mask_ref[1:2, :]    # zero out wrapped w==W-1 column
        acc = acc + wcol(9)                            # folded BN shift
        o_ref[...] = acc.astype(o_ref.dtype)

    return kernel


def _pick_num_planes(P, HW, itemsize):
    """Planes per grid step: a multiple of the sublane tile that divides P
    (or P itself), sized so double-buffered blocks stay small in VMEM."""
    sub = 8 * (4 // max(1, itemsize))              # 8 for f32, 16 for bf16
    cands = [t for t in range(sub, P + 1, sub) if P % t == 0]
    if not cands:
        return P
    budget = 1 << 20                               # ~1 MiB per input block
    good = [t for t in cands if t * HW * itemsize <= budget]
    return max(good) if good else min(cands)


def residual_forward(x_nchw, params, eps=1e-5):
    """Residual(Conv2d_BN(dim, dim, 3, 1, 1, groups=dim)) eval forward.

    x_nchw: [B, C, H, W] (PyTorch layout). Returns [B, C, H, W].
    """
    B, C, H, W = x_nchw.shape
    P, HW = B * C, H * W

    # ---- fold BN (eval) + residual identity into depthwise weights / bias ----
    scale = params["bn_gamma"] / jnp.sqrt(params["bn_var"] + eps)        # [C]
    shift = params["bn_beta"] - params["bn_mean"] * scale                # [C]
    w = params["conv_w"][:, 0, :, :] * scale[:, None, None]              # [C,3,3]
    w = w.at[:, 1, 1].add(1.0)              # residual == identity at centre tap
    wb_c = jnp.concatenate([w.reshape(C, 9), shift[:, None]], axis=1)    # [C,10]
    wb = jnp.tile(wb_c, (B, 1)).astype(jnp.float32)                      # [P,10] (tiny)

    # ---- column-validity masks for the horizontally shifted taps ----
    col = jnp.arange(HW, dtype=jnp.int32) % W
    masks = jnp.stack([(col != 0), (col != W - 1)]).astype(jnp.float32)  # [2,HW]

    # ---- free reshape: NCHW -> [planes, flat spatial] (lane-dense layout) ----
    x_flat = x_nchw.reshape(P, HW)

    TP = _pick_num_planes(P, HW, x_nchw.dtype.itemsize)
    steps = P // TP
    OFF = ((W + 1 + 127) // 128) * 128       # lane-aligned image start in scratch
    FL = OFF + HW + W + 1                    # leading halo + image + trailing halo

    kernel = _make_kernel(W, HW, OFF)
    out_flat = pl.pallas_call(
        kernel,
        out_shape=jax.ShapeDtypeStruct((P, HW), x_nchw.dtype),
        grid=(steps,),
        in_specs=[
            pl.BlockSpec((TP, HW), lambda i: (i, 0)),     # input planes (pipelined)
            pl.BlockSpec((TP, 10), lambda i: (i, 0)),     # folded weights + bias
            pl.BlockSpec((2, HW), lambda i: (0, 0)),      # masks: VMEM-resident
        ],
        out_specs=pl.BlockSpec((TP, HW), lambda i: (i, 0)),
        scratch_shapes=[pltpu.VMEM((TP, FL), jnp.float32)],
        compiler_params=pltpu.CompilerParams(
            dimension_semantics=("parallel",),            # steps are independent
        ),
    )(x_flat, wb, masks)

    return out_flat.reshape(B, C, H, W)


def make_params(key, dim):
    """Deterministic synthetic parameters for Conv2d_BN(dim, dim, 3, 1, 1, groups=dim)."""
    k0, k1, k2, k3, k4 = jax.random.split(key, 5)
    std = 0.1
    conv_w = jnp.clip(jax.random.normal(k0, (dim, 1, 3, 3)) * std, -2 * std, 2 * std)
    return {
        "conv_w": conv_w.astype(jnp.float32),                        # [C,1,3,3] depthwise
        "bn_gamma": (1.0 + 0.1 * jax.random.normal(k1, (dim,))).astype(jnp.float32),
        "bn_beta": (0.1 * jax.random.normal(k2, (dim,))).astype(jnp.float32),
        "bn_mean": (0.05 * jax.random.normal(k3, (dim,))).astype(jnp.float32),
        "bn_var": jnp.abs(1.0 + 0.1 * jax.random.normal(k4, (dim,))).astype(jnp.float32),
    }


def reference_forward(x_nchw, params, eps=1e-5):
    """Pure-JAX reference mirroring the PyTorch eval-mode forward: x + BN(DWConv(x))."""
    C = x_nchw.shape[1]
    y = lax.conv_general_dilated(
        x_nchw, params["conv_w"],
        window_strides=(1, 1), padding=((1, 1), (1, 1)),
        dimension_numbers=("NCHW", "OIHW", "NCHW"),
        feature_group_count=C)
    scale = params["bn_gamma"] / jnp.sqrt(params["bn_var"] + eps)
    shift = params["bn_beta"] - params["bn_mean"] * scale
    y = y * scale[None, :, None, None] + shift[None, :, None, None]
    return x_nchw + y


if __name__ == "__main__":
    B, C, H, W = 2, 4, 16, 16
    key = jax.random.PRNGKey(0)
    kx, kp = jax.random.split(key)
    x = jax.random.normal(kx, (B, C, H, W), dtype=jnp.float32)
    params = make_params(kp, C)

    out = jax.block_until_ready(residual_forward(x, params))
    ref = reference_forward(x, params)

    assert out.shape == (B, C, H, W)
    assert jnp.allclose(out, ref, atol=1e-4, rtol=1e-4), "mismatch vs reference"
    print("KERNEL_OK")
</pallas_src>

<mosaic_0001>
module attributes {stable_mosaic.version = 11 : i64} {
  func.func @kernel(%arg0: i32, %arg1: memref<8x256xf32, #tpu.memory_space<vmem>>, %arg2: memref<8x10xf32, #tpu.memory_space<vmem>>, %arg3: memref<2x256xf32, #tpu.memory_space<vmem>>, %arg4: memref<8x256xf32, #tpu.memory_space<vmem>>, %arg5: memref<8x401xf32, #tpu.memory_space<vmem>>) attributes {dimension_semantics = [#tpu.dimension_semantics<parallel>], iteration_bounds = array<i64: 1>, scalar_prefetch = 0 : i64, scratch_operands = 1 : i64, tpu.core_type = #tpu.core_type<tc>, window_params = [{transform_indices = @transform_0, window_bounds = array<i64: 8, 256>}, {transform_indices = @transform_1, window_bounds = array<i64: 8, 10>}, {pipeline_mode = #tpu.pipeline_mode<synchronous>, transform_indices = @transform_2, window_bounds = array<i64: 2, 256>}, {transform_indices = @transform_3, window_bounds = array<i64: 8, 256>}]} {
    %cst = arith.constant 0.000000e+00 : f32
    %0 = vector.broadcast %cst : f32 to vector<8x17xf32>
    %c0 = arith.constant 0 : index
    %c111 = arith.constant 111 : index
    %1 = vector.load %arg5[%c0, %c111] : memref<8x401xf32, #tpu.memory_space<vmem>>, vector<8x17xf32>
    tpu.vector_store %arg5[%c0, %c111], %0 {strides = array<i32>} : memref<8x401xf32, #tpu.memory_space<vmem>>, vector<8x17xf32>,
    %c0_0 = arith.constant 0 : index
    %c384 = arith.constant 384 : index
    %2 = vector.load %arg5[%c0_0, %c384] : memref<8x401xf32, #tpu.memory_space<vmem>>, vector<8x17xf32>
    tpu.vector_store %arg5[%c0_0, %c384], %0 {strides = array<i32>} : memref<8x401xf32, #tpu.memory_space<vmem>>, vector<8x17xf32>,
    %c0_1 = arith.constant 0 : index
    %c0_2 = arith.constant 0 : index
    %3 = vector.load %arg1[%c0_1, %c0_2] : memref<8x256xf32, #tpu.memory_space<vmem>>, vector<8x256xf32>
    %c0_3 = arith.constant 0 : index
    %c128 = arith.constant 128 : index
    %4 = vector.load %arg5[%c0_3, %c128] : memref<8x401xf32, #tpu.memory_space<vmem>>, vector<8x256xf32>
    tpu.vector_store %arg5[%c0_3, %c128], %3 {strides = array<i32>} : memref<8x401xf32, #tpu.memory_space<vmem>>, vector<8x256xf32>,
    %c0_4 = arith.constant 0 : index
    %c1 = arith.constant 1 : index
    %5 = vector.load %arg2[%c0_4, %c1] : memref<8x10xf32, #tpu.memory_space<vmem>>, vector<8x1xf32>
    %c0_5 = arith.constant 0 : index
    %c112 = arith.constant 112 : index
    %6 = vector.load %arg5[%c0_5, %c112] : memref<8x401xf32, #tpu.memory_space<vmem>>, vector<8x256xf32>
    %7 = vector.broadcast %5 : vector<8x1xf32> to vector<8x256xf32>
    %8 = arith.mulf %7, %6 : vector<8x256xf32>
    %c0_6 = arith.constant 0 : index
    %c4 = arith.constant 4 : index
    %9 = vector.load %arg2[%c0_6, %c4] : memref<8x10xf32, #tpu.memory_space<vmem>>, vector<8x1xf32>
    %c0_7 = arith.constant 0 : index
    %c128_8 = arith.constant 128 : index
    %10 = vector.load %arg5[%c0_7, %c128_8] : memref<8x401xf32, #tpu.memory_space<vmem>>, vector<8x256xf32>
    %11 = vector.broadcast %9 : vector<8x1xf32> to vector<8x256xf32>
    %12 = arith.mulf %11, %10 : vector<8x256xf32>
    %13 = arith.addf %8, %12 : vector<8x256xf32>
    %c0_9 = arith.constant 0 : index
    %c7 = arith.constant 7 : index
    %14 = vector.load %arg2[%c0_9, %c7] : memref<8x10xf32, #tpu.memory_space<vmem>>, vector<8x1xf32>
    %c0_10 = arith.constant 0 : index
    %c144 = arith.constant 144 : index
    %15 = vector.load %arg5[%c0_10, %c144] : memref<8x401xf32, #tpu.memory_space<vmem>>, vector<8x256xf32>
    %16 = vector.broadcast %14 : vector<8x1xf32> to vector<8x256xf32>
    %17 = arith.mulf %16, %15 : vector<8x256xf32>
    %18 = arith.addf %13, %17 : vector<8x256xf32>
    %c0_11 = arith.constant 0 : index
    %c0_12 = arith.constant 0 : index
    %19 = vector.load %arg2[%c0_11, %c0_12] : memref<8x10xf32, #tpu.memory_space<vmem>>, vector<8x1xf32>
    %c0_13 = arith.constant 0 : index
    %c111_14 = arith.constant 111 : index
    %20 = vector.load %arg5[%c0_13, %c111_14] : memref<8x401xf32, #tpu.memory_space<vmem>>, vector<8x256xf32>
    %21 = vector.broadcast %19 : vector<8x1xf32> to vector<8x256xf32>
    %22 = arith.mulf %21, %20 : vector<8x256xf32>
    %c0_15 = arith.constant 0 : index
    %c3 = arith.constant 3 : index
    %23 = vector.load %arg2[%c0_15, %c3] : memref<8x10xf32, #tpu.memory_space<vmem>>, vector<8x1xf32>
    %c0_16 = arith.constant 0 : index
    %c127 = arith.constant 127 : index
    %24 = vector.load %arg5[%c0_16, %c127] : memref<8x401xf32, #tpu.memory_space<vmem>>, vector<8x256xf32>
    %25 = vector.broadcast %23 : vector<8x1xf32> to vector<8x256xf32>
    %26 = arith.mulf %25, %24 : vector<8x256xf32>
    %27 = arith.addf %22, %26 : vector<8x256xf32>
    %c0_17 = arith.constant 0 : index
    %c6 = arith.constant 6 : index
    %28 = vector.load %arg2[%c0_17, %c6] : memref<8x10xf32, #tpu.memory_space<vmem>>, vector<8x1xf32>
    %c0_18 = arith.constant 0 : index
    %c143 = arith.constant 143 : index
    %29 = vector.load %arg5[%c0_18, %c143] : memref<8x401xf32, #tpu.memory_space<vmem>>, vector<8x256xf32>
    %30 = vector.broadcast %28 : vector<8x1xf32> to vector<8x256xf32>
    %31 = arith.mulf %30, %29 : vector<8x256xf32>
    %32 = arith.addf %27, %31 : vector<8x256xf32>
    %c0_19 = arith.constant 0 : index
    %c0_20 = arith.constant 0 : index
    %33 = vector.load %arg3[%c0_19, %c0_20] : memref<2x256xf32, #tpu.memory_space<vmem>>, vector<1x256xf32>
    %34 = vector.broadcast %33 : vector<1x256xf32> to vector<8x256xf32>
    %35 = arith.mulf %32, %34 : vector<8x256xf32>
    %36 = arith.addf %18, %35 : vector<8x256xf32>
    %c0_21 = arith.constant 0 : index
    %c2 = arith.constant 2 : index
    %37 = vector.load %arg2[%c0_21, %c2] : memref<8x10xf32, #tpu.memory_space<vmem>>, vector<8x1xf32>
    %c0_22 = arith.constant 0 : index
    %c113 = arith.constant 113 : index
    %38 = vector.load %arg5[%c0_22, %c113] : memref<8x401xf32, #tpu.memory_space<vmem>>, vector<8x256xf32>
    %39 = vector.broadcast %37 : vector<8x1xf32> to vector<8x256xf32>
    %40 = arith.mulf %39, %38 : vector<8x256xf32>
    %c0_23 = arith.constant 0 : index
    %c5 = arith.constant 5 : index
    %41 = vector.load %arg2[%c0_23, %c5] : memref<8x10xf32, #tpu.memory_space<vmem>>, vector<8x1xf32>
    %c0_24 = arith.constant 0 : index
    %c129 = arith.constant 129 : index
    %42 = vector.load %arg5[%c0_24, %c129] : memref<8x401xf32, #tpu.memory_space<vmem>>, vector<8x256xf32>
    %43 = vector.broadcast %41 : vector<8x1xf32> to vector<8x256xf32>
    %44 = arith.mulf %43, %42 : vector<8x256xf32>
    %45 = arith.addf %40, %44 : vector<8x256xf32>
    %c0_25 = arith.constant 0 : index
    %c8 = arith.constant 8 : index
    %46 = vector.load %arg2[%c0_25, %c8] : memref<8x10xf32, #tpu.memory_space<vmem>>, vector<8x1xf32>
    %c0_26 = arith.constant 0 : index
    %c145 = arith.constant 145 : index
    %47 = vector.load %arg5[%c0_26, %c145] : memref<8x401xf32, #tpu.memory_space<vmem>>, vector<8x256xf32>
    %48 = vector.broadcast %46 : vector<8x1xf32> to vector<8x256xf32>
    %49 = arith.mulf %48, %47 : vector<8x256xf32>
    %50 = arith.addf %45, %49 : vector<8x256xf32>
    %c1_27 = arith.constant 1 : index
    %c0_28 = arith.constant 0 : index
    %51 = vector.load %arg3[%c1_27, %c0_28] : memref<2x256xf32, #tpu.memory_space<vmem>>, vector<1x256xf32>
    %52 = vector.broadcast %51 : vector<1x256xf32> to vector<8x256xf32>
    %53 = arith.mulf %50, %52 : vector<8x256xf32>
    %54 = arith.addf %36, %53 : vector<8x256xf32>
    %c0_29 = arith.constant 0 : index
    %c9 = arith.constant 9 : index
    %55 = vector.load %arg2[%c0_29, %c9] : memref<8x10xf32, #tpu.memory_space<vmem>>, vector<8x1xf32>
    %56 = vector.broadcast %55 : vector<8x1xf32> to vector<8x256xf32>
    %57 = arith.addf %54, %56 : vector<8x256xf32>
    %c0_30 = arith.constant 0 : index
    %c0_31 = arith.constant 0 : index
    %58 = vector.load %arg4[%c0_30, %c0_31] : memref<8x256xf32, #tpu.memory_space<vmem>>, vector<8x256xf32>
    tpu.vector_store %arg4[%c0_30, %c0_31], %57 {strides = array<i32>} : memref<8x256xf32, #tpu.memory_space<vmem>>, vector<8x256xf32>,
    return
  }
  func.func @transform_0(%arg0: i32) -> (i32, i32) {
    %c0_i32 = arith.constant 0 : i32
    %c0_i32_0 = arith.constant 0 : i32
    return %arg0, %c0_i32 : i32, i32
  }
  func.func @transform_1(%arg0: i32) -> (i32, i32) {
    %c0_i32 = arith.constant 0 : i32
    %c0_i32_0 = arith.constant 0 : i32
    return %arg0, %c0_i32 : i32, i32
  }
  func.func @transform_2(%arg0: i32) -> (i32, i32) {
    %c0_i32 = arith.constant 0 : i32
    %c0_i32_0 = arith.constant 0 : i32
    %c0_i32_1 = arith.constant 0 : i32
    return %c0_i32, %c0_i32_0 : i32, i32
  }
  func.func @transform_3(%arg0: i32) -> (i32, i32) {
    %c0_i32 = arith.constant 0 : i32
    %c0_i32_0 = arith.constant 0 : i32
    return %arg0, %c0_i32 : i32, i32
  }
}

</mosaic_0001>

<llo_original>
// kernel: tpu_custom_call.1
$region0: #{tpu_custom_call.1}
  #allocation0 [shape = 'u32[]', space=smem, size = 0x4, offset = 0x4, fixed_abs, tag = 'smem constant byte address 0x4 - core index']
  #allocation1 [shape = 'u32[144,128]{1,0:T(1,128)}', space=vmem, size = 0x12000, scoped, tag = 'internal scratch']
  #allocation2 [shape = 'f32[8,401]{1,0:T(8,128)}', space=vmem, size = 0x4000, scoped, tag = 'scratch operand']
  %s0 = inlined_call_operand.hbm [shape: f32[8,256], index: 0, kind: input, shape index: {}]
  %s1 = inlined_call_operand.hbm [shape: f32[8,10], index: 1, kind: input, shape index: {}]
  %s2 = inlined_call_operand.hbm [shape: f32[2,256], index: 2, kind: input, shape index: {}]
  %s3 = inlined_call_operand.hbm [shape: f32[8,256], index: 3, kind: output, shape index: {}]
  %s4 = sld [smem:[#allocation0]]
  $region34: #{tpu_custom_call.1} parent=0
    _
  %s6 = ssub.s32 1, %s4
  %s7 = scalar_select 0, %s6, %s4
  $region1: #{tpu_custom_call.1} parent=0
    #allocation3 [shape = 'u8[8192]{0}', space=vmem, size = 0x2000, scoped, tag = 'input window, operand 0, single buffered']
    #allocation4 [shape = 's32[1]{0}', space=sflag, size = 0x4, scoped, tag = 'scoped memory for tpu_custom_call.1']
    #allocation5 [shape = 's32[1]{0}', space=sflag, size = 0x4, scoped, tag = 'scoped memory for tpu_custom_call.1']
    #allocation6 [shape = 'u8[4096]{0}', space=vmem, size = 0x1000, scoped, tag = 'input window, operand 1, single buffered']
    #allocation7 [shape = 's32[1]{0}', space=sflag, size = 0x4, scoped, tag = 'scoped memory for tpu_custom_call.1']
    #allocation8 [shape = 'u8[2048]{0}', space=vmem, size = 0x800, scoped, tag = 'input window, operand 2, single buffered']
    #allocation9 [shape = 'u8[8192]{0}', space=vmem, size = 0x2000, scoped, tag = 'output window, operand 0, single buffered']
    %8 = vsyncpa [#allocation4], 0
    %9 = vsyncpa [#allocation7], 0
    %10 = vsyncpa [#allocation5], 0
    // Predicated region
    $region2: #{tpu_custom_call.1} parent=1 // pred_check
      _
    $region3: #{tpu_custom_call.1} parent=1 // pred_check_branch
      %12 = sbr.rel (0) target = $region5
    $region4: #{tpu_custom_call.1} parent=1 // pred_region
      %s14 = ssub.s32 256, 256
      %15 = vsyncadd [#allocation4], %s14
      %s17 = sshll.u32 [#allocation3], 4
      %s18 = int_to_ptr.vmem [resolvable:$true] %s17
      %20 = dma.hbm_to_vmem [thread:$0]  %s0, 256, %s18, [#allocation4]
    $region5: #{tpu_custom_call.1} parent=1 // pred_fallthru
      _
    // Predicated region
    $region6: #{tpu_custom_call.1} parent=1 // pred_check
      _
    $region7: #{tpu_custom_call.1} parent=1 // pred_check_branch
      %22 = sbr.rel (0) target = $region9
    $region8: #{tpu_custom_call.1} parent=1 // pred_region
      %s24 = ssub.s32 128, 128
      %25 = vsyncadd [#allocation7], %s24
      %s27 = sshll.u32 [#allocation6], 4
      %s28 = int_to_ptr.vmem [resolvable:$true] %s27
      %30 = dma.hbm_to_vmem [thread:$0]  %s1, 128, %s28, [#allocation7]
    $region9: #{tpu_custom_call.1} parent=1 // pred_fallthru
      _
    // Predicated region
    $region10: #{tpu_custom_call.1} parent=1 // pred_check
      _
    $region11: #{tpu_custom_call.1} parent=1 // pred_check_branch
      %32 = sbr.rel (0) target = $region13
    $region12: #{tpu_custom_call.1} parent=1 // pred_region
      %s34 = ssub.s32 64, 64
      %35 = vsyncadd [#allocation7], %s34
      %s37 = sshll.u32 [#allocation8], 4
      %s38 = int_to_ptr.vmem [resolvable:$true] %s37
      %40 = dma.hbm_to_vmem [thread:$0]  %s2, 64, %s38, [#allocation7]
    $region13: #{tpu_custom_call.1} parent=1 // pred_fallthru
      _
    // Predicated region
    $region14: #{tpu_custom_call.1} parent=1 // pred_check
      _
    $region15: #{tpu_custom_call.1} parent=1 // pred_check_branch
      %42 = sbr.rel (0) target = $region17
    $region16: #{tpu_custom_call.1} parent=1 // pred_region
      %43 = dma.done [#allocation4], 256
    $region17: #{tpu_custom_call.1} parent=1 // pred_fallthru
      _
    // Predicated region
    $region18: #{tpu_custom_call.1} parent=1 // pred_check
      _
    $region19: #{tpu_custom_call.1} parent=1 // pred_check_branch
      %45 = sbr.rel (0) target = $region21
    $region20: #{tpu_custom_call.1} parent=1 // pred_region
      %46 = dma.done [#allocation7], 128
    $region21: #{tpu_custom_call.1} parent=1 // pred_fallthru
      _
    // Predicated region
    $region22: #{tpu_custom_call.1} parent=1 // pred_check
      _
    $region23: #{tpu_custom_call.1} parent=1 // pred_check_branch
      %48 = sbr.rel (0) target = $region25
    $region24: #{tpu_custom_call.1} parent=1 // pred_region
      %49 = dma.done [#allocation7], 64
    $region25: #{tpu_custom_call.1} parent=1 // pred_fallthru
      _
    %vm50 = vcmask 1048440
    %51 = vst.msk [vmem:[#allocation2] sm:$0xff] %vm50, 0.0
    %vm52 = vcmask 138240
    %53 = vst.msk [vmem:[#allocation2 + $0x18] sm:$0xff] %vm52, 0.0
    %v54 = vld [vmem:[#allocation3] sm:$0xff]
    %v55 = vld [vmem:[#allocation3 + $0x8] sm:$0xff]
    %56 = vst [vmem:[#allocation2 + $0x8] sm:$0xff] %v54
    %57 = vst [vmem:[#allocation2 + $0x10] sm:$0xff] %v55
    %v58 = vld [vmem:[#allocation6] sm:$0xff]
    %v59 = vld [vmem:[#allocation2] sm:$0xff]
    %v60 = vld [vmem:[#allocation2 + $0x8] sm:$0xff]
    %v61 = vld [vmem:[#allocation2 + $0x10] sm:$0xff]
    %63 = vset.pattern.permute.xlu0 1
    %64 = vperm.xlu0 %63, %v58
    %v65 = vpop.permute.xlu0 %64
    %v67 = vmul.f32 %v65, %v59
    %v68 = vmul.f32 %v65, %v60
    %v69 = vmul.f32 %v65, %v61
    %70 = vset.pattern.permute.xlu0 4
    %71 = vperm.xlu0 %70, %v58
    %v72 = vpop.permute.xlu0 %71
    %v74 = vmul.f32 %v72, %v60
    %v75 = vmul.f32 %v72, %v61
    %78 = vrot.lane.b32.xlu0 %v74, 112
    %v79 = vpop.permute.xlu0 %78
    %80 = vrot.lane.b32.xlu0 %v75, 112
    %v81 = vpop.permute.xlu0 %80
    %vm82 = vcmask 916480
    %v83 = vsel %vm82, %v79, %v81
    %v87 = vadd.f32 %v67, %v79
    %v88 = vadd.f32 %v68, %v83
    %v89 = vadd.f32 %v69, %v81
    %v90 = vld [vmem:[#allocation2 + $0x8] sm:$0xff]
    %v91 = vld [vmem:[#allocation2 + $0x10] sm:$0xff]
    %v92 = vld [vmem:[#allocation2 + $0x18] sm:$0xff]
    %93 = vset.pattern.permute.xlu0 7
    %94 = vperm.xlu0 %93, %v58
    %v95 = vpop.permute.xlu0 %94
    %v97 = vmul.f32 %v95, %v90
    %v98 = vmul.f32 %v95, %v91
    %v99 = vmul.f32 %v95, %v92
    %103 = vrot.lane.b32.xlu0 %v97, 96
    %v104 = vpop.permute.xlu0 %103
    %105 = vrot.lane.b32.xlu0 %v98, 96
    %v106 = vpop.permute.xlu0 %105
    %107 = vrot.lane.b32.xlu0 %v99, 96
    %v108 = vpop.permute.xlu0 %107
    %vm109 = vcmask 785408
    %v110 = vsel %vm109, %v104, %v106
    %v111 = vsel %vm109, %v106, %v108
    %v115 = vadd.f32 %v87, %v104
    %v116 = vadd.f32 %v88, %v110
    %v117 = vadd.f32 %v89, %v111
    %118 = vset.pattern.permute.xlu0 0
    %119 = vperm.xlu0 %118, %v58
    %v120 = vpop.permute.xlu0 %119
    %v122 = vmul.f32 %v120, %v59
    %v123 = vmul.f32 %v120, %v60
    %v124 = vmul.f32 %v120, %v61
    %125 = vset.pattern.permute.xlu0 3
    %126 = vperm.xlu0 %125, %v58
    %v127 = vpop.permute.xlu0 %126
    %v129 = vmul.f32 %v127, %v59
    %v130 = vmul.f32 %v127, %v60
    %v131 = vmul.f32 %v127, %v61
    %135 = vrot.lane.b32.xlu0 %v129, 112
    %v136 = vpop.permute.xlu0 %135
    %137 = vrot.lane.b32.xlu0 %v130, 112
    %v138 = vpop.permute.xlu0 %137
    %139 = vrot.lane.b32.xlu0 %v131, 112
    %v140 = vpop.permute.xlu0 %139
    %v141 = vsel %vm82, %v136, %v138
    %v142 = vsel %vm82, %v138, %v140
    %v146 = vadd.f32 %v122, %v141
    %v147 = vadd.f32 %v123, %v142
    %v148 = vadd.f32 %v124, %v140
    %149 = vset.pattern.permute.xlu0 6
    %150 = vperm.xlu0 %149, %v58
    %v151 = vpop.permute.xlu0 %150
    %v153 = vmul.f32 %v151, %v90
    %v154 = vmul.f32 %v151, %v91
    %v155 = vmul.f32 %v151, %v92
    %159 = vrot.lane.b32.xlu0 %v153, 96
    %v160 = vpop.permute.xlu0 %159
    %161 = vrot.lane.b32.xlu0 %v154, 96
    %v162 = vpop.permute.xlu0 %161
    %163 = vrot.lane.b32.xlu0 %v155, 96
    %v164 = vpop.permute.xlu0 %163
    %v165 = vsel %vm109, %v160, %v162
    %v166 = vsel %vm109, %v162, %v164
    %v170 = vadd.f32 %v146, %v160
    %v171 = vadd.f32 %v147, %v165
    %v172 = vadd.f32 %v148, %v166
    %v173 = vld [vmem:[#allocation8] ss:$2 sm:$0x3]
    %v175 = vlaneseq
    %v176 = vshrl.u32 %v175, 7
    %v177 = vsub.s32 0, %v176
    %v178 = vrot.slane %v173, %v177
    %v179 = vlaneseq
    %v180 = vshrl.u32 %v179, 7
    %v181 = vsub.s32 1, %v180
    %v182 = vrot.slane %v173, %v181
    %183 = vrot.lane.b32.xlu0 %v178, 111
    %v184 = vpop.permute.xlu0 %183
    %185 = vrot.lane.b32.xlu0 %v182, 111
    %v186 = vpop.permute.xlu0 %185
    %vm187 = vcmask 908288
    %v188 = vsel %vm187, %v184, %v186
    %v192 = vmul.f32 %v170, %v184
    %v193 = vmul.f32 %v171, %v188
    %v194 = vmul.f32 %v172, %v186
    %198 = vrot.lane.b32.xlu0 %v192, 1
    %v199 = vpop.permute.xlu0 %198
    %200 = vrot.lane.b32.xlu0 %v193, 1
    %v201 = vpop.permute.xlu0 %200
    %202 = vrot.lane.b32.xlu0 %v194, 1
    %v203 = vpop.permute.xlu0 %202
    %vm204 = vcmask 7168
    %v205 = vsel %vm204, %v199, %v201
    %v206 = vsel %vm204, %v201, %v203
    %v210 = vadd.f32 %v115, %v199
    %v211 = vadd.f32 %v116, %v205
    %v212 = vadd.f32 %v117, %v206
    %213 = vset.pattern.permute.xlu0 2
    %214 = vperm.xlu0 %213, %v58
    %v215 = vpop.permute.xlu0 %214
    %v217 = vmul.f32 %v215, %v59
    %v218 = vmul.f32 %v215, %v60
    %v219 = vmul.f32 %v215, %v61
    %220 = vset.pattern.permute.xlu0 5
    %221 = vperm.xlu0 %220, %v58
    %v222 = vpop.permute.xlu0 %221
    %v224 = vmul.f32 %v222, %v90
    %v225 = vmul.f32 %v222, %v91
    %v226 = vmul.f32 %v222, %v92
    %230 = vrot.lane.b32.xlu0 %v224, 112
    %v231 = vpop.permute.xlu0 %230
    %232 = vrot.lane.b32.xlu0 %v225, 112
    %v233 = vpop.permute.xlu0 %232
    %234 = vrot.lane.b32.xlu0 %v226, 112
    %v235 = vpop.permute.xlu0 %234
    %v236 = vsel %vm82, %v231, %v233
    %v237 = vsel %vm82, %v233, %v235
    %v241 = vadd.f32 %v217, %v231
    %v242 = vadd.f32 %v218, %v236
    %v243 = vadd.f32 %v219, %v237
    %244 = vset.pattern.permute.xlu0 8
    %245 = vperm.xlu0 %244, %v58
    %v246 = vpop.permute.xlu0 %245
    %v248 = vmul.f32 %v246, %v90
    %v249 = vmul.f32 %v246, %v91
    %v250 = vmul.f32 %v246, %v92
    %254 = vrot.lane.b32.xlu0 %v248, 96
    %v255 = vpop.permute.xlu0 %254
    %256 = vrot.lane.b32.xlu0 %v249, 96
    %v257 = vpop.permute.xlu0 %256
    %258 = vrot.lane.b32.xlu0 %v250, 96
    %v259 = vpop.permute.xlu0 %258
    %v260 = vsel %vm109, %v255, %v257
    %v261 = vsel %vm109, %v257, %v259
    %v265 = vadd.f32 %v241, %v255
    %v266 = vadd.f32 %v242, %v260
    %v267 = vadd.f32 %v243, %v261
    %s268 = scalar_lea.vmem [#allocation8], 1
    %v269 = vld [vmem:[%s268] ss:$2 sm:$0x3]
    %v271 = vlaneseq
    %v272 = vshrl.u32 %v271, 7
    %v273 = vsub.s32 0, %v272
    %v274 = vrot.slane %v269, %v273
    %v275 = vlaneseq
    %v276 = vshrl.u32 %v275, 7
    %v277 = vsub.s32 1, %v276
    %v278 = vrot.slane %v269, %v277
    %279 = vrot.lane.b32.xlu0 %v274, 113
    %v280 = vpop.permute.xlu0 %279
    %281 = vrot.lane.b32.xlu0 %v278, 113
    %v282 = vpop.permute.xlu0 %281
    %vm283 = vcmask 924672
    %v284 = vsel %vm283, %v280, %v282
    %v288 = vmul.f32 %v265, %v280
    %v289 = vmul.f32 %v266, %v284
    %v290 = vmul.f32 %v267, %v282
    %294 = vrot.lane.b32.xlu0 %v288, 127
    %v295 = vpop.permute.xlu0 %294
    %296 = vrot.lane.b32.xlu0 %v289, 127
    %v297 = vpop.permute.xlu0 %296
    %298 = vrot.lane.b32.xlu0 %v290, 127
    %v299 = vpop.permute.xlu0 %298
    %vm300 = vcmask 1039360
    %v301 = vsel %vm300, %v295, %v297
    %v302 = vsel %vm300, %v297, %v299
    %v306 = vadd.f32 %v210, %v301
    %v307 = vadd.f32 %v211, %v302
    %v308 = vadd.f32 %v212, %v299
    %309 = vset.pattern.permute.xlu0 9
    %310 = vperm.xlu0 %309, %v58
    %v311 = vpop.permute.xlu0 %310
    %v313 = vadd.f32 %v306, %v311
    %v314 = vadd.f32 %v307, %v311
    %v315 = vadd.f32 %v308, %v311
    %319 = vrot.lane.b32.xlu0 %v313, 16
    %v320 = vpop.permute.xlu0 %319
    %321 = vrot.lane.b32.xlu0 %v314, 16
    %v322 = vpop.permute.xlu0 %321
    %323 = vrot.lane.b32.xlu0 %v315, 16
    %v324 = vpop.permute.xlu0 %323
    %vm325 = vcmask 130048
    %v326 = vsel %vm325, %v320, %v322
    %v327 = vsel %vm325, %v322, %v324
    %330 = vst [vmem:[#allocation9] sm:$0xff] %v326
    %331 = vst [vmem:[#allocation9 + $0x8] sm:$0xff] %v327
    // Predicated region
    $region26: #{tpu_custom_call.1} parent=1 // pred_check
      _
    $region27: #{tpu_custom_call.1} parent=1 // pred_check_branch
      %333 = sbr.rel (0) target = $region29
    $region28: #{tpu_custom_call.1} parent=1 // pred_region
      %s335 = ssub.s32 256, 256
      %336 = vsyncadd [#allocation5], %s335
      %s338 = sshll.u32 [#allocation9], 4
      %s339 = int_to_ptr.vmem [resolvable:$true] %s338
      %341 = dma.vmem_to_hbm [thread:$0]  %s339, 256, %s3, [#allocation5]
    $region29: #{tpu_custom_call.1} parent=1 // pred_fallthru
      _
    // Predicated region
    $region30: #{tpu_custom_call.1} parent=1 // pred_check
      _
    $region31: #{tpu_custom_call.1} parent=1 // pred_check_branch
      %343 = sbr.rel (0) target = $region33
    $region32: #{tpu_custom_call.1} parent=1 // pred_region
      %344 = dma.done [#allocation5], 256
    $region33: #{tpu_custom_call.1} parent=1 // pred_fallthru
      _
    %345 = vsyncpa [#allocation4], 1
    %346 = vsyncpa [#allocation7], 1
    %347 = vsyncpa [#allocation5], 1

</llo_original>
